<compile_context>
chip_gen: v7x
topology: tpu7x:2x2x1
jax: 0.10.0
libtpu: 0.0.40
codegen_flags: <defaults>
</compile_context>

<pallas_src>
from functools import partial

import jax
import jax.numpy as jnp
from jax.experimental import pallas as pl
from jax.experimental.pallas import tpu as pltpu

EPS = 1e-5


# ---------------------------------------------------------------------------
# helpers
# ---------------------------------------------------------------------------
def _round_up(x, m):
    return ((x + m - 1) // m) * m


def _pick_tile(l_pad, target):
    """Largest multiple of 128 that is <= target and divides l_pad."""
    target = max(128, (target // 128) * 128)
    if l_pad <= target:
        return l_pad
    t = target
    while t >= 128:
        if l_pad % t == 0:
            return t
        t -= 128
    return 128  # l_pad is a multiple of 128, so this always divides


def _accum_stats(v, l_idx, tile_l, true_l, m0_ref, s_ref, q_ref):
    """Accumulate shift-stable per-batch BatchNorm partial statistics.

    v: (C, tile_l) values of the current tile (any float dtype).
    Columns whose global index (l_idx*tile_l + col) >= true_l are padding and
    are excluded.  At l_idx == 0 the (masked) tile mean m0 is computed and
    stored; all tiles then accumulate sum(v - m0) and sum((v - m0)^2) into
    lane-dense (C, 128) accumulators (VPU adds only, no per-tile XLU reduce).
    """
    c = v.shape[0]
    n_chunks = tile_l // 128
    lane = jax.lax.broadcasted_iota(jnp.int32, (1, 128), 1)
    base = l_idx * tile_l

    @pl.when(l_idx == 0)
    def _init():
        n0 = min(tile_l, true_l)
        s0 = jnp.zeros((c, 128), jnp.float32)
        for j in range(n_chunks):
            blk = v[:, j * 128:(j + 1) * 128].astype(jnp.float32)
            valid = (j * 128 + lane) < true_l
            s0 = s0 + jnp.where(valid, blk, 0.0)
        m0 = jnp.sum(s0, axis=1, keepdims=True) * (1.0 / n0)
        m0_ref[...] = jnp.broadcast_to(m0, m0_ref.shape)
        s_ref[...] = jnp.zeros_like(s_ref)
        q_ref[...] = jnp.zeros_like(q_ref)

    m0b = m0_ref[...]                                     # (C, 128), lanes equal
    s_acc = jnp.zeros((c, 128), jnp.float32)
    q_acc = jnp.zeros((c, 128), jnp.float32)
    for j in range(n_chunks):
        blk = v[:, j * 128:(j + 1) * 128].astype(jnp.float32)
        valid = (base + j * 128 + lane) < true_l
        d = jnp.where(valid, blk - m0b, 0.0)
        s_acc = s_acc + d
        q_acc = q_acc + d * d
    s_ref[...] += s_acc
    q_ref[...] += q_acc


def _combine_stats(m0, s, q, n_per_batch, n_total):
    """Combine per-batch shifted partials into exact global mean / variance.

    m0, s, q: (B, C, 128).  For batch b (shift m0_b, n = n_per_batch):
      sum_b            = sum(v)           = s_b + n*m0_b
      sum((v - mu)^2)  = q_b + 2*(m0_b - mu)*s_b + n*(m0_b - mu)^2
    """
    m0b = m0[:, :, 0]                       # (B, C)
    ss = jnp.sum(s, axis=-1)                # (B, C)
    qq = jnp.sum(q, axis=-1)                # (B, C)
    sum_b = ss + n_per_batch * m0b
    mean = jnp.sum(sum_b, axis=0) / n_total                  # (C,)
    d = m0b - mean[None, :]
    m2 = jnp.sum(qq + 2.0 * d * ss + n_per_batch * d * d, axis=0)
    var = jnp.maximum(m2 / n_total, 0.0)                      # biased variance
    return mean, var


# ---------------------------------------------------------------------------
# small-shape path: one fused grid-less kernel (launch-overhead dominated)
# ---------------------------------------------------------------------------
def _fused_forward(x, params):
    B, Cin, L = x.shape
    w1, b1, g1, be1 = params["w1"], params["b1"], params["g1"], params["be1"]
    w2, b2, g2, be2 = params["w2"], params["b2"], params["g2"], params["be2"]
    Cmid, Cout = w1.shape[0], w2.shape[0]
    N = float(B * L)

    def kernel(x_ref, w1_ref, b1_ref, g1_ref, be1_ref,
               w2_ref, b2_ref, g2_ref, be2_ref, out_ref):
        # conv1 (k=1) per batch; everything stays f32 & VMEM-resident.
        us, s1 = [], jnp.zeros((Cmid, 1), jnp.float32)
        for b in range(B):
            u = jnp.dot(w1_ref[...], x_ref[b],
                        preferred_element_type=jnp.float32) + b1_ref[...]
            us.append(u)
            s1 = s1 + jnp.sum(u, axis=1, keepdims=True)
        mean1 = s1 / N
        q1 = jnp.zeros((Cmid, 1), jnp.float32)
        for b in range(B):
            d = us[b] - mean1
            q1 = q1 + jnp.sum(d * d, axis=1, keepdims=True)
        sc1 = g1_ref[...] * jax.lax.rsqrt(q1 / N + EPS)
        sh1 = be1_ref[...] - mean1 * sc1

        zs, s2 = [], jnp.zeros((Cout, 1), jnp.float32)
        for b in range(B):
            y = jnp.maximum(us[b] * sc1 + sh1, 0.0)
            z = jnp.dot(w2_ref[...], y,
                        preferred_element_type=jnp.float32) + b2_ref[...]
            zs.append(z)
            s2 = s2 + jnp.sum(z, axis=1, keepdims=True)
        mean2 = s2 / N
        q2 = jnp.zeros((Cout, 1), jnp.float32)
        for b in range(B):
            d = zs[b] - mean2
            q2 = q2 + jnp.sum(d * d, axis=1, keepdims=True)
        sc2 = g2_ref[...] * jax.lax.rsqrt(q2 / N + EPS)
        sh2 = be2_ref[...] - mean2 * sc2
        for b in range(B):
            out_ref[b] = zs[b] * sc2 + sh2

    return pl.pallas_call(
        kernel,
        out_shape=jax.ShapeDtypeStruct((B, Cout, L), jnp.float32),
    )(x, w1, b1, g1, be1, w2, b2, g2, be2)


# ---------------------------------------------------------------------------
# large-shape path: three bandwidth-lean pipelined passes
# ---------------------------------------------------------------------------
def _tiled_forward(x, params, tile_target):
    B, Cin, L = x.shape
    w1 = params["w1"]                        # conv1 bias cancels through BN1
    g1, be1 = params["g1"], params["be1"]
    w2, b2 = params["w2"], params["b2"]
    g2, be2 = params["g2"], params["be2"]
    Cmid, Cout = w1.shape[0], w2.shape[0]
    N = B * L

    Lp = _round_up(L, 128)
    tL = _pick_tile(Lp, tile_target)
    if Lp != L:
        x = jnp.pad(x, ((0, 0), (0, 0), (0, Lp - L)))
    grid = (B, Lp // tL)

    # Pre-cast resident weights once (no per-grid-step bf16 repack).
    w1_bf = w1.astype(jnp.bfloat16)
    w2_bf = w2.astype(jnp.bfloat16)

    x_spec = pl.BlockSpec((None, Cin, tL), lambda b, l: (b, 0, l))
    u_spec = pl.BlockSpec((None, Cmid, tL), lambda b, l: (b, 0, l))
    z_spec = pl.BlockSpec((None, Cout, tL), lambda b, l: (b, 0, l))

    def res_spec(shape):                     # grid-resident full-array block
        return pl.BlockSpec(shape, lambda b, l, _s=shape: (0,) * len(_s))

    def stat_spec(c):                        # per-batch partial accumulator
        return pl.BlockSpec((None, c, 128), lambda b, l: (b, 0, 0))

    def stat_shape(c):
        return jax.ShapeDtypeStruct((B, c, 128), jnp.float32)

    # ---- pass 1: u = W1 @ x -> HBM (bf16), per-batch BN1 partial stats -----
    def pass1_kernel(x_ref, w1_ref, u_ref, m0_ref, s_ref, q_ref):
        l = pl.program_id(1)
        u = jnp.dot(w1_ref[...], x_ref[...].astype(jnp.bfloat16),
                    preferred_element_type=jnp.float32)
        u_bf = u.astype(jnp.bfloat16)
        u_ref[...] = u_bf
        # Stats on the bf16-rounded values (exactly what pass 2 consumes).
        _accum_stats(u_bf, l, tL, L, m0_ref, s_ref, q_ref)

    u_hbm, m0_1, s1, q1 = pl.pallas_call(
        pass1_kernel,
        grid=grid,
        in_specs=[x_spec, res_spec((Cmid, Cin))],
        out_specs=(u_spec, stat_spec(Cmid), stat_spec(Cmid), stat_spec(Cmid)),
        out_shape=(jax.ShapeDtypeStruct((B, Cmid, Lp), jnp.bfloat16),
                   stat_shape(Cmid), stat_shape(Cmid), stat_shape(Cmid)),
        compiler_params=pltpu.CompilerParams(
            dimension_semantics=("parallel", "arbitrary")),
    )(x, w1_bf)

    mean_u, var_u = _combine_stats(m0_1, s1, q1, L, N)
    mean_u = mean_u[:, None]
    var_u = var_u[:, None]
    scale1 = g1 * jax.lax.rsqrt(var_u + EPS)
    beta1 = be1 - mean_u * scale1            # conv1 bias cancels exactly in BN1

    # ---- pass 2: y = relu(scale1*u + beta1); z = W2@y + b2; BN2 stats ------
    def pass2_kernel(u_ref, a1_ref, bb1_ref, w2_ref, b2_ref,
                     z_ref, m0_ref, s_ref, q_ref):
        l = pl.program_id(1)
        u = u_ref[...].astype(jnp.float32)
        y = jnp.maximum(u * a1_ref[...] + bb1_ref[...], 0.0)
        z = jnp.dot(w2_ref[...], y.astype(jnp.bfloat16),
                    preferred_element_type=jnp.float32) + b2_ref[...]
        z_ref[...] = z
        _accum_stats(z, l, tL, L, m0_ref, s_ref, q_ref)

    z_pre, m0_2, s2, q2 = pl.pallas_call(
        pass2_kernel,
        grid=grid,
        in_specs=[u_spec, res_spec((Cmid, 1)), res_spec((Cmid, 1)),
                  res_spec((Cout, Cmid)), res_spec((Cout, 1))],
        out_specs=(z_spec, stat_spec(Cout), stat_spec(Cout), stat_spec(Cout)),
        out_shape=(jax.ShapeDtypeStruct((B, Cout, Lp), jnp.float32),
                   stat_shape(Cout), stat_shape(Cout), stat_shape(Cout)),
        compiler_params=pltpu.CompilerParams(
            dimension_semantics=("parallel", "arbitrary")),
    )(u_hbm, scale1, beta1, w2_bf, b2)

    mean_z, var_z = _combine_stats(m0_2, s2, q2, L, N)
    mean_z = mean_z[:, None]
    var_z = var_z[:, None]
    scale2 = g2 * jax.lax.rsqrt(var_z + EPS)
    shift2 = be2 - mean_z * scale2

    # ---- pass 3: apply BN2 affine; output aliases z_pre's HBM buffer -------
    def pass3_kernel(z_ref, a_ref, c_ref, o_ref):
        o_ref[...] = z_ref[...] * a_ref[...] + c_ref[...]

    out = pl.pallas_call(
        pass3_kernel,
        grid=grid,
        in_specs=[z_spec, res_spec((Cout, 1)), res_spec((Cout, 1))],
        out_specs=z_spec,
        out_shape=jax.ShapeDtypeStruct((B, Cout, Lp), jnp.float32),
        input_output_aliases={0: 0},
        compiler_params=pltpu.CompilerParams(
            dimension_semantics=("parallel", "parallel")),
    )(z_pre, scale2, shift2)

    if Lp != L:
        out = out[:, :, :L]
    return out


# ---------------------------------------------------------------------------
# public entry point
# ---------------------------------------------------------------------------
@partial(jax.jit, static_argnames=("tile_target",))
def tf_decoder_forward(features, params, tile_target=2048):
    """features: (B, 2*mid_channels, L) f32 -> (B, input_channels, L) f32."""
    B, Cin, L = features.shape
    Cmid = params["w1"].shape[0]
    Cout = params["w2"].shape[0]
    approx_bytes = 4 * B * L * (Cin + 2 * Cmid + 2 * Cout)
    if B <= 16 and approx_bytes <= (256 << 10):
        return _fused_forward(features, params)       # latency-bound shapes
    return _tiled_forward(features, params, tile_target)


def init_params(key, mid_channels, input_channels):
    """Synthetic params matching the PyTorch module (native Conv1d layout)."""
    cin = 2 * mid_channels
    k1, k2, k3, k4 = jax.random.split(key, 4)
    w1 = jax.random.normal(k1, (mid_channels, cin), jnp.float32) * 0.1
    b1 = jax.random.normal(k2, (mid_channels, 1), jnp.float32) * 0.1
    w2 = jax.random.normal(k3, (input_channels, mid_channels), jnp.float32) * 0.1
    b2 = jax.random.normal(k4, (input_channels, 1), jnp.float32) * 0.1
    g1 = jnp.ones((mid_channels, 1), jnp.float32)
    be1 = jnp.zeros((mid_channels, 1), jnp.float32)
    g2 = jnp.ones((input_channels, 1), jnp.float32)
    be2 = jnp.zeros((input_channels, 1), jnp.float32)
    return dict(w1=w1, b1=b1, g1=g1, be1=be1,
                w2=w2, b2=b2, g2=g2, be2=be2)


def _reference_forward(features, params):
    """Pure-JAX f32 reference (training-mode BN, biased variance)."""
    P = jax.lax.Precision.HIGHEST
    w1, b1, g1, be1 = params["w1"], params["b1"], params["g1"], params["be1"]
    w2, b2, g2, be2 = params["w2"], params["b2"], params["g2"], params["be2"]
    y = jnp.einsum("oc,bcl->bol", w1, features, precision=P) + b1[None]
    m1 = jnp.mean(y, axis=(0, 2), keepdims=True)
    v1 = jnp.mean((y - m1) ** 2, axis=(0, 2), keepdims=True)
    y = (y - m1) * jax.lax.rsqrt(v1 + EPS) * g1[None] + be1[None]
    y = jnp.maximum(y, 0.0)
    z = jnp.einsum("oc,bcl->bol", w2, y, precision=P) + b2[None]
    m2 = jnp.mean(z, axis=(0, 2), keepdims=True)
    v2 = jnp.mean((z - m2) ** 2, axis=(0, 2), keepdims=True)
    return (z - m2) * jax.lax.rsqrt(v2 + EPS) * g2[None] + be2[None]


if __name__ == "__main__":
    key = jax.random.PRNGKey(0)
    k1, k2, k3, k4 = jax.random.split(key, 4)

    # --- small config (fused single-kernel path), module-consistent defaults ---
    B, mid_channels, input_channels, L = 2, 32, 4, 16
    x_small = jax.random.normal(k1, (B, 2 * mid_channels, L), jnp.float32)
    p_small = init_params(k2, mid_channels, input_channels)
    out_small = tf_decoder_forward(x_small, p_small)
    jax.block_until_ready(out_small)
    assert out_small.shape == (B, input_channels, L), out_small.shape
    assert bool(jnp.all(jnp.isfinite(out_small)))
    err_small = float(jnp.max(jnp.abs(out_small - _reference_forward(x_small, p_small))))
    assert err_small < 3e-2, f"fused path max abs error: {err_small}"

    # --- larger config exercising the tiled 3-pass path (padding + tiles) ------
    B2, mid2, in2, L2 = 3, 32, 5, 700          # L2 pads to 768 = 3 tiles of 256
    x_big = jax.random.normal(k3, (B2, 2 * mid2, L2), jnp.float32)
    p_big = init_params(k4, mid2, in2)
    out_big = tf_decoder_forward(x_big, p_big, tile_target=256)
    jax.block_until_ready(out_big)
    assert out_big.shape == (B2, in2, L2), out_big.shape
    assert bool(jnp.all(jnp.isfinite(out_big)))
    err_big = float(jnp.max(jnp.abs(out_big - _reference_forward(x_big, p_big))))
    assert err_big < 0.15, f"tiled path max abs error: {err_big}"

    print("KERNEL_OK")
</pallas_src>

<mosaic_0001>
module attributes {stable_mosaic.version = 11 : i64} {
  func.func @kernel(%arg0: memref<2x64x16xf32, #tpu.memory_space<vmem>>, %arg1: memref<32x64xf32, #tpu.memory_space<vmem>>, %arg2: memref<32x1xf32, #tpu.memory_space<vmem>>, %arg3: memref<32x1xf32, #tpu.memory_space<vmem>>, %arg4: memref<32x1xf32, #tpu.memory_space<vmem>>, %arg5: memref<4x32xf32, #tpu.memory_space<vmem>>, %arg6: memref<4x1xf32, #tpu.memory_space<vmem>>, %arg7: memref<4x1xf32, #tpu.memory_space<vmem>>, %arg8: memref<4x1xf32, #tpu.memory_space<vmem>>, %arg9: memref<2x4x16xf32, #tpu.memory_space<vmem>>) attributes {dimension_semantics = [], scalar_prefetch = 0 : i64, scratch_operands = 0 : i64, tpu.core_type = #tpu.core_type<tc>} {
    %cst = arith.constant 0.000000e+00 : f32
    %0 = vector.broadcast %cst : f32 to vector<32x1xf32>
    %c0 = arith.constant 0 : index
    %c0_0 = arith.constant 0 : index
    %1 = vector.load %arg1[%c0, %c0_0] : memref<32x64xf32, #tpu.memory_space<vmem>>, vector<32x64xf32>
    %c0_1 = arith.constant 0 : index
    %c0_2 = arith.constant 0 : index
    %c0_3 = arith.constant 0 : index
    %2 = vector.load %arg0[%c0_1, %c0_2, %c0_3] : memref<2x64x16xf32, #tpu.memory_space<vmem>>, vector<1x64x16xf32>
    %3 = vector.shape_cast %2 : vector<1x64x16xf32> to vector<64x16xf32>
    %cst_4 = arith.constant dense<0.000000e+00> : vector<32x16xf32>
    %4 = tpu.matmul %1, %3, %cst_4 {dimension_numbers = #tpu.dot_dimension_numbers<[1], [0], [0], [1], [0, 0, 1, 1], [], []>} : vector<32x64xf32>, vector<64x16xf32>, vector<32x16xf32> -> vector<32x16xf32>
    %c0_5 = arith.constant 0 : index
    %c0_6 = arith.constant 0 : index
    %5 = vector.load %arg2[%c0_5, %c0_6] : memref<32x1xf32, #tpu.memory_space<vmem>>, vector<32x1xf32>
    %6 = vector.broadcast %5 : vector<32x1xf32> to vector<32x16xf32>
    %7 = arith.addf %4, %6 : vector<32x16xf32>
    %cst_7 = arith.constant dense<0.000000e+00> : vector<32xf32>
    %8 = vector.multi_reduction <add>, %7, %cst_7 [1] : vector<32x16xf32> to vector<32xf32>
    %9 = vector.shape_cast %8 : vector<32xf32> to vector<32x1xf32>
    %10 = arith.addf %0, %9 : vector<32x1xf32>
    %c0_8 = arith.constant 0 : index
    %c0_9 = arith.constant 0 : index
    %11 = vector.load %arg1[%c0_8, %c0_9] : memref<32x64xf32, #tpu.memory_space<vmem>>, vector<32x64xf32>
    %c1 = arith.constant 1 : index
    %c0_10 = arith.constant 0 : index
    %c0_11 = arith.constant 0 : index
    %12 = vector.load %arg0[%c1, %c0_10, %c0_11] : memref<2x64x16xf32, #tpu.memory_space<vmem>>, vector<1x64x16xf32>
    %13 = vector.shape_cast %12 : vector<1x64x16xf32> to vector<64x16xf32>
    %cst_12 = arith.constant dense<0.000000e+00> : vector<32x16xf32>
    %14 = tpu.matmul %11, %13, %cst_12 {dimension_numbers = #tpu.dot_dimension_numbers<[1], [0], [0], [1], [0, 0, 1, 1], [], []>} : vector<32x64xf32>, vector<64x16xf32>, vector<32x16xf32> -> vector<32x16xf32>
    %c0_13 = arith.constant 0 : index
    %c0_14 = arith.constant 0 : index
    %15 = vector.load %arg2[%c0_13, %c0_14] : memref<32x1xf32, #tpu.memory_space<vmem>>, vector<32x1xf32>
    %16 = vector.broadcast %15 : vector<32x1xf32> to vector<32x16xf32>
    %17 = arith.addf %14, %16 : vector<32x16xf32>
    %cst_15 = arith.constant dense<0.000000e+00> : vector<32xf32>
    %18 = vector.multi_reduction <add>, %17, %cst_15 [1] : vector<32x16xf32> to vector<32xf32>
    %19 = vector.shape_cast %18 : vector<32xf32> to vector<32x1xf32>
    %20 = arith.addf %10, %19 : vector<32x1xf32>
    %cst_16 = arith.constant 3.200000e+01 : f32
    %21 = vector.broadcast %cst_16 : f32 to vector<32x1xf32>
    %22 = arith.divf %20, %21 : vector<32x1xf32>
    %cst_17 = arith.constant 0.000000e+00 : f32
    %23 = vector.broadcast %cst_17 : f32 to vector<32x1xf32>
    %24 = vector.broadcast %22 : vector<32x1xf32> to vector<32x16xf32>
    %25 = arith.subf %7, %24 : vector<32x16xf32>
    %26 = arith.mulf %25, %25 : vector<32x16xf32>
    %cst_18 = arith.constant dense<0.000000e+00> : vector<32xf32>
    %27 = vector.multi_reduction <add>, %26, %cst_18 [1] : vector<32x16xf32> to vector<32xf32>
    %28 = vector.shape_cast %27 : vector<32xf32> to vector<32x1xf32>
    %29 = arith.addf %23, %28 : vector<32x1xf32>
    %30 = vector.broadcast %22 : vector<32x1xf32> to vector<32x16xf32>
    %31 = arith.subf %17, %30 : vector<32x16xf32>
    %32 = arith.mulf %31, %31 : vector<32x16xf32>
    %cst_19 = arith.constant dense<0.000000e+00> : vector<32xf32>
    %33 = vector.multi_reduction <add>, %32, %cst_19 [1] : vector<32x16xf32> to vector<32xf32>
    %34 = vector.shape_cast %33 : vector<32xf32> to vector<32x1xf32>
    %35 = arith.addf %29, %34 : vector<32x1xf32>
    %c0_20 = arith.constant 0 : index
    %c0_21 = arith.constant 0 : index
    %36 = vector.load %arg3[%c0_20, %c0_21] : memref<32x1xf32, #tpu.memory_space<vmem>>, vector<32x1xf32>
    %cst_22 = arith.constant 3.200000e+01 : f32
    %37 = vector.broadcast %cst_22 : f32 to vector<32x1xf32>
    %38 = arith.divf %35, %37 : vector<32x1xf32>
    %cst_23 = arith.constant 9.99999974E-6 : f32
    %39 = vector.broadcast %cst_23 : f32 to vector<32x1xf32>
    %40 = arith.addf %38, %39 : vector<32x1xf32>
    %41 = math.rsqrt %40 : vector<32x1xf32>
    %42 = arith.mulf %36, %41 : vector<32x1xf32>
    %c0_24 = arith.constant 0 : index
    %c0_25 = arith.constant 0 : index
    %43 = vector.load %arg4[%c0_24, %c0_25] : memref<32x1xf32, #tpu.memory_space<vmem>>, vector<32x1xf32>
    %44 = arith.mulf %22, %42 : vector<32x1xf32>
    %45 = arith.subf %43, %44 : vector<32x1xf32>
    %cst_26 = arith.constant 0.000000e+00 : f32
    %46 = vector.broadcast %cst_26 : f32 to vector<4x1xf32>
    %47 = vector.broadcast %42 : vector<32x1xf32> to vector<32x16xf32>
    %48 = arith.mulf %7, %47 : vector<32x16xf32>
    %49 = vector.broadcast %45 : vector<32x1xf32> to vector<32x16xf32>
    %50 = arith.addf %48, %49 : vector<32x16xf32>
    %cst_27 = arith.constant 0.000000e+00 : f32
    %51 = vector.broadcast %cst_27 : f32 to vector<32x16xf32>
    %52 = arith.maximumf %50, %51 : vector<32x16xf32>
    %c0_28 = arith.constant 0 : index
    %c0_29 = arith.constant 0 : index
    %53 = vector.load %arg5[%c0_28, %c0_29] : memref<4x32xf32, #tpu.memory_space<vmem>>, vector<4x32xf32>
    %cst_30 = arith.constant dense<0.000000e+00> : vector<4x16xf32>
    %54 = tpu.matmul %53, %52, %cst_30 {dimension_numbers = #tpu.dot_dimension_numbers<[1], [0], [0], [1], [0, 0, 1, 1], [], []>} : vector<4x32xf32>, vector<32x16xf32>, vector<4x16xf32> -> vector<4x16xf32>
    %c0_31 = arith.constant 0 : index
    %c0_32 = arith.constant 0 : index
    %55 = vector.load %arg6[%c0_31, %c0_32] : memref<4x1xf32, #tpu.memory_space<vmem>>, vector<4x1xf32>
    %56 = vector.broadcast %55 : vector<4x1xf32> to vector<4x16xf32>
    %57 = arith.addf %54, %56 : vector<4x16xf32>
    %cst_33 = arith.constant dense<0.000000e+00> : vector<4xf32>
    %58 = vector.multi_reduction <add>, %57, %cst_33 [1] : vector<4x16xf32> to vector<4xf32>
    %59 = vector.shape_cast %58 : vector<4xf32> to vector<4x1xf32>
    %60 = arith.addf %46, %59 : vector<4x1xf32>
    %61 = vector.broadcast %42 : vector<32x1xf32> to vector<32x16xf32>
    %62 = arith.mulf %17, %61 : vector<32x16xf32>
    %63 = vector.broadcast %45 : vector<32x1xf32> to vector<32x16xf32>
    %64 = arith.addf %62, %63 : vector<32x16xf32>
    %cst_34 = arith.constant 0.000000e+00 : f32
    %65 = vector.broadcast %cst_34 : f32 to vector<32x16xf32>
    %66 = arith.maximumf %64, %65 : vector<32x16xf32>
    %c0_35 = arith.constant 0 : index
    %c0_36 = arith.constant 0 : index
    %67 = vector.load %arg5[%c0_35, %c0_36] : memref<4x32xf32, #tpu.memory_space<vmem>>, vector<4x32xf32>
    %cst_37 = arith.constant dense<0.000000e+00> : vector<4x16xf32>
    %68 = tpu.matmul %67, %66, %cst_37 {dimension_numbers = #tpu.dot_dimension_numbers<[1], [0], [0], [1], [0, 0, 1, 1], [], []>} : vector<4x32xf32>, vector<32x16xf32>, vector<4x16xf32> -> vector<4x16xf32>
    %c0_38 = arith.constant 0 : index
    %c0_39 = arith.constant 0 : index
    %69 = vector.load %arg6[%c0_38, %c0_39] : memref<4x1xf32, #tpu.memory_space<vmem>>, vector<4x1xf32>
    %70 = vector.broadcast %69 : vector<4x1xf32> to vector<4x16xf32>
    %71 = arith.addf %68, %70 : vector<4x16xf32>
    %cst_40 = arith.constant dense<0.000000e+00> : vector<4xf32>
    %72 = vector.multi_reduction <add>, %71, %cst_40 [1] : vector<4x16xf32> to vector<4xf32>
    %73 = vector.shape_cast %72 : vector<4xf32> to vector<4x1xf32>
    %74 = arith.addf %60, %73 : vector<4x1xf32>
    %cst_41 = arith.constant 3.200000e+01 : f32
    %75 = vector.broadcast %cst_41 : f32 to vector<4x1xf32>
    %76 = arith.divf %74, %75 : vector<4x1xf32>
    %cst_42 = arith.constant 0.000000e+00 : f32
    %77 = vector.broadcast %cst_42 : f32 to vector<4x1xf32>
    %78 = vector.broadcast %76 : vector<4x1xf32> to vector<4x16xf32>
    %79 = arith.subf %57, %78 : vector<4x16xf32>
    %80 = arith.mulf %79, %79 : vector<4x16xf32>
    %cst_43 = arith.constant dense<0.000000e+00> : vector<4xf32>
    %81 = vector.multi_reduction <add>, %80, %cst_43 [1] : vector<4x16xf32> to vector<4xf32>
    %82 = vector.shape_cast %81 : vector<4xf32> to vector<4x1xf32>
    %83 = arith.addf %77, %82 : vector<4x1xf32>
    %84 = vector.broadcast %76 : vector<4x1xf32> to vector<4x16xf32>
    %85 = arith.subf %71, %84 : vector<4x16xf32>
    %86 = arith.mulf %85, %85 : vector<4x16xf32>
    %cst_44 = arith.constant dense<0.000000e+00> : vector<4xf32>
    %87 = vector.multi_reduction <add>, %86, %cst_44 [1] : vector<4x16xf32> to vector<4xf32>
    %88 = vector.shape_cast %87 : vector<4xf32> to vector<4x1xf32>
    %89 = arith.addf %83, %88 : vector<4x1xf32>
    %c0_45 = arith.constant 0 : index
    %c0_46 = arith.constant 0 : index
    %90 = vector.load %arg7[%c0_45, %c0_46] : memref<4x1xf32, #tpu.memory_space<vmem>>, vector<4x1xf32>
    %cst_47 = arith.constant 3.200000e+01 : f32
    %91 = vector.broadcast %cst_47 : f32 to vector<4x1xf32>
    %92 = arith.divf %89, %91 : vector<4x1xf32>
    %cst_48 = arith.constant 9.99999974E-6 : f32
    %93 = vector.broadcast %cst_48 : f32 to vector<4x1xf32>
    %94 = arith.addf %92, %93 : vector<4x1xf32>
    %95 = math.rsqrt %94 : vector<4x1xf32>
    %96 = arith.mulf %90, %95 : vector<4x1xf32>
    %c0_49 = arith.constant 0 : index
    %c0_50 = arith.constant 0 : index
    %97 = vector.load %arg8[%c0_49, %c0_50] : memref<4x1xf32, #tpu.memory_space<vmem>>, vector<4x1xf32>
    %98 = arith.mulf %76, %96 : vector<4x1xf32>
    %99 = arith.subf %97, %98 : vector<4x1xf32>
    %100 = vector.broadcast %96 : vector<4x1xf32> to vector<4x16xf32>
    %101 = arith.mulf %57, %100 : vector<4x16xf32>
    %102 = vector.broadcast %99 : vector<4x1xf32> to vector<4x16xf32>
    %103 = arith.addf %101, %102 : vector<4x16xf32>
    %c0_51 = arith.constant 0 : index
    %c0_52 = arith.constant 0 : index
    %c0_53 = arith.constant 0 : index
    %104 = vector.load %arg9[%c0_51, %c0_52, %c0_53] : memref<2x4x16xf32, #tpu.memory_space<vmem>>, vector<1x4x16xf32>
    %105 = vector.shape_cast %104 : vector<1x4x16xf32> to vector<4x16xf32>
    %106 = vector.shape_cast %103 : vector<4x16xf32> to vector<1x4x16xf32>
    tpu.vector_store %arg9[%c0_51, %c0_52, %c0_53], %106 {strides = array<i32>} : memref<2x4x16xf32, #tpu.memory_space<vmem>>, vector<1x4x16xf32>,
    %107 = vector.broadcast %96 : vector<4x1xf32> to vector<4x16xf32>
    %108 = arith.mulf %71, %107 : vector<4x16xf32>
    %109 = vector.broadcast %99 : vector<4x1xf32> to vector<4x16xf32>
    %110 = arith.addf %108, %109 : vector<4x16xf32>
    %c1_54 = arith.constant 1 : index
    %c0_55 = arith.constant 0 : index
    %c0_56 = arith.constant 0 : index
    %111 = vector.load %arg9[%c1_54, %c0_55, %c0_56] : memref<2x4x16xf32, #tpu.memory_space<vmem>>, vector<1x4x16xf32>
    %112 = vector.shape_cast %111 : vector<1x4x16xf32> to vector<4x16xf32>
    %113 = vector.shape_cast %110 : vector<4x16xf32> to vector<1x4x16xf32>
    tpu.vector_store %arg9[%c1_54, %c0_55, %c0_56], %113 {strides = array<i32>} : memref<2x4x16xf32, #tpu.memory_space<vmem>>, vector<1x4x16xf32>,
    return
  }
}

</mosaic_0001>

<llo_original>
// kernel: tf_decoder_forward.1
$region0: #{tf_decoder_forward.1}
  #allocation0 [shape = 'u32[]', space=smem, size = 0x4, offset = 0x4, fixed_abs, tag = 'smem constant byte address 0x4 - core index']
  #allocation1 [shape = 'u32[144,128]{1,0:T(1,128)}', space=vmem, size = 0x12000, scoped, tag = 'internal scratch']
  %s0 = inlined_call_operand.vmem [shape: f32[2,64,16], index: 0, kind: input, shape index: {}]
  %s1 = inlined_call_operand.vmem [shape: f32[32,64], index: 1, kind: input, shape index: {}]
  %s2 = inlined_call_operand.vmem [shape: f32[32,1], index: 2, kind: input, shape index: {}]
  %s3 = inlined_call_operand.vmem [shape: f32[32,1], index: 3, kind: input, shape index: {}]
  %s4 = inlined_call_operand.vmem [shape: f32[32,1], index: 4, kind: input, shape index: {}]
  %s5 = inlined_call_operand.vmem [shape: f32[4,32], index: 5, kind: input, shape index: {}]
  %s6 = inlined_call_operand.vmem [shape: f32[4,1], index: 6, kind: input, shape index: {}]
  %s7 = inlined_call_operand.vmem [shape: f32[4,1], index: 7, kind: input, shape index: {}]
  %s8 = inlined_call_operand.vmem [shape: f32[4,1], index: 8, kind: input, shape index: {}]
  %s9 = inlined_call_operand.hbm [shape: f32[2,4,16], index: 9, kind: output, shape index: {}]
  %s10 = sld [smem:[#allocation0]]
  $region46: #{tf_decoder_forward.1} parent=0
    _
  %s12 = ssub.s32 1, %s10
  %s13 = scalar_select 0, %s12, %s10
  $region1: #{tf_decoder_forward.1} parent=0
    #allocation2 [shape = 'u8[4096]{0}', space=vmem, size = 0x1000, scoped, tag = 'output window, operand 0, single buffered']
    #allocation3 [shape = 's32[1]{0}', space=sflag, size = 0x4, scoped, tag = 'scoped memory for tf_decoder_forward.1']
    %14 = vsyncpa [#allocation3], 0
    // Predicated region
    $region2: #{tf_decoder_forward.1} parent=1 // pred_check
      _
    $region3: #{tf_decoder_forward.1} parent=1 // pred_check_branch
      %16 = sbr.rel (0) target = $region5
    $region4: #{tf_decoder_forward.1} parent=1 // pred_region
      _
    $region5: #{tf_decoder_forward.1} parent=1 // pred_fallthru
      _
    // Predicated region
    $region6: #{tf_decoder_forward.1} parent=1 // pred_check
      _
    $region7: #{tf_decoder_forward.1} parent=1 // pred_check_branch
      %18 = sbr.rel (0) target = $region9
    $region8: #{tf_decoder_forward.1} parent=1 // pred_region
      _
    $region9: #{tf_decoder_forward.1} parent=1 // pred_fallthru
      _
    // Predicated region
    $region10: #{tf_decoder_forward.1} parent=1 // pred_check
      _
    $region11: #{tf_decoder_forward.1} parent=1 // pred_check_branch
      %20 = sbr.rel (0) target = $region13
    $region12: #{tf_decoder_forward.1} parent=1 // pred_region
      _
    $region13: #{tf_decoder_forward.1} parent=1 // pred_fallthru
      _
    // Predicated region
    $region14: #{tf_decoder_forward.1} parent=1 // pred_check
      _
    $region15: #{tf_decoder_forward.1} parent=1 // pred_check_branch
      %22 = sbr.rel (0) target = $region17
    $region16: #{tf_decoder_forward.1} parent=1 // pred_region
      _
    $region17: #{tf_decoder_forward.1} parent=1 // pred_fallthru
      _
    // Predicated region
    $region18: #{tf_decoder_forward.1} parent=1 // pred_check
      _
    $region19: #{tf_decoder_forward.1} parent=1 // pred_check_branch
      %24 = sbr.rel (0) target = $region21
    $region20: #{tf_decoder_forward.1} parent=1 // pred_region
      _
    $region21: #{tf_decoder_forward.1} parent=1 // pred_fallthru
      _
    // Predicated region
    $region22: #{tf_decoder_forward.1} parent=1 // pred_check
      _
    $region23: #{tf_decoder_forward.1} parent=1 // pred_check_branch
      %26 = sbr.rel (0) target = $region25
    $region24: #{tf_decoder_forward.1} parent=1 // pred_region
      _
    $region25: #{tf_decoder_forward.1} parent=1 // pred_fallthru
      _
    // Predicated region
    $region26: #{tf_decoder_forward.1} parent=1 // pred_check
      _
    $region27: #{tf_decoder_forward.1} parent=1 // pred_check_branch
      %28 = sbr.rel (0) target = $region29
    $region28: #{tf_decoder_forward.1} parent=1 // pred_region
      _
    $region29: #{tf_decoder_forward.1} parent=1 // pred_fallthru
      _
    // Predicated region
    $region30: #{tf_decoder_forward.1} parent=1 // pred_check
      _
    $region31: #{tf_decoder_forward.1} parent=1 // pred_check_branch
      %30 = sbr.rel (0) target = $region33
    $region32: #{tf_decoder_forward.1} parent=1 // pred_region
      _
    $region33: #{tf_decoder_forward.1} parent=1 // pred_fallthru
      _
    // Predicated region
    $region34: #{tf_decoder_forward.1} parent=1 // pred_check
      _
    $region35: #{tf_decoder_forward.1} parent=1 // pred_check_branch
      %32 = sbr.rel (0) target = $region37
    $region36: #{tf_decoder_forward.1} parent=1 // pred_region
      _
    $region37: #{tf_decoder_forward.1} parent=1 // pred_fallthru
      _
    %v33 = vld [vmem:[%s1] sm:$0xff]
    %v34 = vld [vmem:[%s1 + $0x8] sm:$0xff]
    %v35 = vld [vmem:[%s1 + $0x10] sm:$0xff]
    %v36 = vld [vmem:[%s1 + $0x18] sm:$0xff]
    %v37 = vld [vmem:[%s0] sm:$0xff]
    %v38 = vld [vmem:[%s0 + $0x8] sm:$0xff]
    %v39 = vld [vmem:[%s0 + $0x10] sm:$0xff]
    %v40 = vld [vmem:[%s0 + $0x18] sm:$0xff]
    %v41 = vld [vmem:[%s0 + $0x20] sm:$0xff]
    %v42 = vld [vmem:[%s0 + $0x28] sm:$0xff]
    %v43 = vld [vmem:[%s0 + $0x30] sm:$0xff]
    %v44 = vld [vmem:[%s0 + $0x38] sm:$0xff]
    %v45 = vld [vmem:[%s2] sm:$0xff]
    %v46 = vld [vmem:[%s2 + $0x8] sm:$0xff]
    %v47 = vld [vmem:[%s2 + $0x10] sm:$0xff]
    %v48 = vld [vmem:[%s2 + $0x18] sm:$0xff]
    %50 = vset.pattern.permute.xlu0 0
    %51 = vperm.xlu0 %50, %v45
    %v52 = vpop.permute.xlu0 %51
    %55 = vset.pattern.permute.xlu0 0
    %56 = vperm.xlu0 %55, %v46
    %v57 = vpop.permute.xlu0 %56
    %60 = vset.pattern.permute.xlu0 0
    %61 = vperm.xlu0 %60, %v47
    %v62 = vpop.permute.xlu0 %61
    %65 = vset.pattern.permute.xlu0 0
    %66 = vperm.xlu0 %65, %v48
    %v67 = vpop.permute.xlu0 %66
    %vm69 = vcmask 523264
    %v71 = vsel %vm69, %v33, 0
    %v74 = vsel %vm69, %v34, 0
    %v77 = vsel %vm69, %v35, 0
    %v80 = vsel %vm69, %v36, 0
    %82 = vmatprep.subr.mxu0 0.0
    %83 = vmatpush1.msra.mxu0 %v37
    %84 = vmatprep.subr.mxu0 0.0
    %85 = vmatpush1.msra.mxu0 %v38
    %86 = vmatprep.subr.mxu0 0.0
    %87 = vmatpush1.msra.mxu0 %v39
    %88 = vmatprep.subr.mxu0 0.0
    %89 = vmatpush1.msra.mxu0 %v40
    %90 = vmatprep.subr.mxu0 0.0
    %91 = vmatpush1.msra.mxu0 %v41
    %92 = vmatprep.subr.mxu0 0.0
    %93 = vmatpush1.msra.mxu0 %v42
    %94 = vmatprep.subr.mxu0 0.0
    %95 = vmatpush1.msra.mxu0 %v43
    %96 = vmatprep.subr.mxu0 0.0
    %97 = vmatpush1.msra.mxu0 %v44
    %98 = vmatprep.subr.mxu0 0.0
    %99 = vmatpush1.msra.mxu0 0.0
    %100 = vmatprep.subr.mxu0 0.0
    %101 = vmatpush1.msra.mxu0 0.0
    %102 = vmatprep.subr.mxu0 0.0
    %103 = vmatpush1.msra.mxu0 0.0
    %104 = vmatprep.subr.mxu0 0.0
    %105 = vmatpush1.msra.mxu0 0.0
    %106 = vmatprep.subr.mxu0 0.0
    %107 = vmatpush1.msra.mxu0 0.0
    %108 = vmatprep.subr.mxu0 0.0
    %109 = vmatpush1.msra.mxu0 0.0
    %110 = vmatprep.subr.mxu0 0.0
    %111 = vmatpush1.msra.mxu0 0.0
    %112 = vmatprep.subr.mxu0 0.0
    %113 = vmatpush1.msra.mxu0 0.0
    %114 = vmatprep.subr.mxu0 0.0
    %115 = vmatpush1.msra.mxu0 0.0
    %116 = vmatprep.subr.mxu0 0.0
    %117 = vmatpush1.msra.mxu0 0.0
    %118 = vmatprep.subr.mxu0 0.0
    %119 = vmatpush1.msra.mxu0 0.0
    %120 = vmatprep.subr.mxu0 0.0
    %121 = vmatpush1.msra.mxu0 0.0
    %122 = vmatprep.subr.mxu0 0.0
    %123 = vmatpush1.msra.mxu0 0.0
    %124 = vmatprep.subr.mxu0 0.0
    %125 = vmatpush1.msra.mxu0 0.0
    %126 = vmatprep.subr.mxu0 0.0
    %127 = vmatpush1.msra.mxu0 0.0
    %128 = vmatprep.subr.mxu0 0.0
    %129 = vmatpush1.msra.mxu0 0.0
    %130 = vmatprep.subr.mxu0 0.0
    %131 = vmatpush1.msra.mxu0 0.0
    %132 = vmatprep.subr.mxu0 0.0
    %133 = vmatpush1.msra.mxu0 0.0
    %134 = vmatprep.subr.mxu0 0.0
    %135 = vmatpush1.msra.mxu0 0.0
    %136 = vmatprep.subr.mxu0 0.0
    %137 = vmatpush1.msra.mxu0 0.0
    %138 = vmatprep.subr.mxu0 0.0
    %139 = vmatpush1.msra.mxu0 0.0
    %140 = vmatprep.subr.mxu0 0.0
    %141 = vmatpush1.msra.mxu0 0.0
    %142 = vmatprep.subr.mxu0 0.0
    %143 = vmatpush1.msra.mxu0 0.0
    %144 = vmatprep.subr.mxu0 0.0
    %145 = vmatpush1.msra.mxu0 0.0
    %146 = vmatprep.mubr.f32.mxu0 0.0
    %147 = vmatmul.mubr.f32.gmra.mrb[0].mxu0 %v71
    %v148 = vpop.f32.mrb[0].mxu0
    %v149 = vadd.f32 %v52, %v148
    %v150 = vpop.f32.mrb[0].mxu0
    %151 = vmatprep.mubr.f32.mxu0 0.0
    %152 = vmatmul.mubr.f32.gmra.mrb[0].mxu0 %v74
    %v153 = vpop.f32.mrb[0].mxu0
    %v154 = vadd.f32 %v57, %v153
    %v155 = vpop.f32.mrb[0].mxu0
    %156 = vmatprep.mubr.f32.mxu0 0.0
    %157 = vmatmul.mubr.f32.gmra.mrb[0].mxu0 %v77
    %v158 = vpop.f32.mrb[0].mxu0
    %v159 = vadd.f32 %v62, %v158
    %v160 = vpop.f32.mrb[0].mxu0
    %161 = vmatprep.mubr.f32.mxu0 0.0
    %162 = vmatmul.mubr.f32.gmra.mrb[0].mxu0 %v80
    %v163 = vpop.f32.mrb[0].mxu0
    %v164 = vadd.f32 %v67, %v163
    %v165 = vpop.f32.mrb[0].mxu0
    %166 = vdwg.mxu0
    %vm167 = vcmask 130048
    %v168 = vsel %vm167, %v149, 0.0
    %169 = vadd.xlane.f32.xlu0 %v168
    %v170 = vpop.xlane.xlu0 %169
    %v171 = vsel %vm167, %v154, 0.0
    %172 = vadd.xlane.f32.xlu0 %v171
    %v173 = vpop.xlane.xlu0 %172
    %v174 = vsel %vm167, %v159, 0.0
    %175 = vadd.xlane.f32.xlu0 %v174
    %v176 = vpop.xlane.xlu0 %175
    %v177 = vsel %vm167, %v164, 0.0
    %178 = vadd.xlane.f32.xlu0 %v177
    %v179 = vpop.xlane.xlu0 %178
    %v180 = vadd.f32 %v170, 0.0
    %v181 = vadd.f32 %v173, 0.0
    %v182 = vadd.f32 %v176, 0.0
    %v183 = vadd.f32 %v179, 0.0
    %s184 = scalar_lea.vmem %s0, 64
    %v185 = vld [vmem:[%s184] sm:$0xff]
    %v186 = vld [vmem:[%s184 + $0x8] sm:$0xff]
    %v187 = vld [vmem:[%s184 + $0x10] sm:$0xff]
    %v188 = vld [vmem:[%s184 + $0x18] sm:$0xff]
    %v189 = vld [vmem:[%s184 + $0x20] sm:$0xff]
    %v190 = vld [vmem:[%s184 + $0x28] sm:$0xff]
    %v191 = vld [vmem:[%s184 + $0x30] sm:$0xff]
    %v192 = vld [vmem:[%s184 + $0x38] sm:$0xff]
    %193 = vmatprep.subr.mxu0 0.0
    %194 = vmatpush1.msra.mxu0 %v185
    %195 = vmatprep.subr.mxu0 0.0
    %196 = vmatpush1.msra.mxu0 %v186
    %197 = vmatprep.subr.mxu0 0.0
    %198 = vmatpush1.msra.mxu0 %v187
    %199 = vmatprep.subr.mxu0 0.0
    %200 = vmatpush1.msra.mxu0 %v188
    %201 = vmatprep.subr.mxu0 0.0
    %202 = vmatpush1.msra.mxu0 %v189
    %203 = vmatprep.subr.mxu0 0.0
    %204 = vmatpush1.msra.mxu0 %v190
    %205 = vmatprep.subr.mxu0 0.0
    %206 = vmatpush1.msra.mxu0 %v191
    %207 = vmatprep.subr.mxu0 0.0
    %208 = vmatpush1.msra.mxu0 %v192
    %209 = vmatprep.subr.mxu0 0.0
    %210 = vmatpush1.msra.mxu0 0.0
    %211 = vmatprep.subr.mxu0 0.0
    %212 = vmatpush1.msra.mxu0 0.0
    %213 = vmatprep.subr.mxu0 0.0
    %214 = vmatpush1.msra.mxu0 0.0
    %215 = vmatprep.subr.mxu0 0.0
    %216 = vmatpush1.msra.mxu0 0.0
    %217 = vmatprep.subr.mxu0 0.0
    %218 = vmatpush1.msra.mxu0 0.0
    %219 = vmatprep.subr.mxu0 0.0
    %220 = vmatpush1.msra.mxu0 0.0
    %221 = vmatprep.subr.mxu0 0.0
    %222 = vmatpush1.msra.mxu0 0.0
    %223 = vmatprep.subr.mxu0 0.0
    %224 = vmatpush1.msra.mxu0 0.0
    %225 = vmatprep.subr.mxu0 0.0
    %226 = vmatpush1.msra.mxu0 0.0
    %227 = vmatprep.subr.mxu0 0.0
    %228 = vmatpush1.msra.mxu0 0.0
    %229 = vmatprep.subr.mxu0 0.0
    %230 = vmatpush1.msra.mxu0 0.0
    %231 = vmatprep.subr.mxu0 0.0
    %232 = vmatpush1.msra.mxu0 0.0
    %233 = vmatprep.subr.mxu0 0.0
    %234 = vmatpush1.msra.mxu0 0.0
    %235 = vmatprep.subr.mxu0 0.0
    %236 = vmatpush1.msra.mxu0 0.0
    %237 = vmatprep.subr.mxu0 0.0
    %238 = vmatpush1.msra.mxu0 0.0
    %239 = vmatprep.subr.mxu0 0.0
    %240 = vmatpush1.msra.mxu0 0.0
    %241 = vmatprep.subr.mxu0 0.0
    %242 = vmatpush1.msra.mxu0 0.0
    %243 = vmatprep.subr.mxu0 0.0
    %244 = vmatpush1.msra.mxu0 0.0
    %245 = vmatprep.subr.mxu0 0.0
    %246 = vmatpush1.msra.mxu0 0.0
    %247 = vmatprep.subr.mxu0 0.0
    %248 = vmatpush1.msra.mxu0 0.0
    %249 = vmatprep.subr.mxu0 0.0
    %250 = vmatpush1.msra.mxu0 0.0
    %251 = vmatprep.subr.mxu0 0.0
    %252 = vmatpush1.msra.mxu0 0.0
    %253 = vmatprep.subr.mxu0 0.0
    %254 = vmatpush1.msra.mxu0 0.0
    %255 = vmatprep.subr.mxu0 0.0
    %256 = vmatpush1.msra.mxu0 0.0
    %257 = vmatprep.mubr.f32.mxu0 0.0
    %258 = vmatmul.mubr.f32.gmra.mrb[0].mxu0 %v71
    %v259 = vpop.f32.mrb[0].mxu0
    %v260 = vadd.f32 %v52, %v259
    %v261 = vpop.f32.mrb[0].mxu0
    %262 = vmatprep.mubr.f32.mxu0 0.0
    %263 = vmatmul.mubr.f32.gmra.mrb[0].mxu0 %v74
    %v264 = vpop.f32.mrb[0].mxu0
    %v265 = vadd.f32 %v57, %v264
    %v266 = vpop.f32.mrb[0].mxu0
    %267 = vmatprep.mubr.f32.mxu0 0.0
    %268 = vmatmul.mubr.f32.gmra.mrb[0].mxu0 %v77
    %v269 = vpop.f32.mrb[0].mxu0
    %v270 = vadd.f32 %v62, %v269
    %v271 = vpop.f32.mrb[0].mxu0
    %272 = vmatprep.mubr.f32.mxu0 0.0
    %273 = vmatmul.mubr.f32.gmra.mrb[0].mxu0 %v80
    %v274 = vpop.f32.mrb[0].mxu0
    %v275 = vadd.f32 %v67, %v274
    %v276 = vpop.f32.mrb[0].mxu0
    %277 = vdwg.mxu0
    %v278 = vsel %vm167, %v260, 0.0
    %279 = vadd.xlane.f32.xlu0 %v278
    %v280 = vpop.xlane.xlu0 %279
    %v281 = vsel %vm167, %v265, 0.0
    %282 = vadd.xlane.f32.xlu0 %v281
    %v283 = vpop.xlane.xlu0 %282
    %v284 = vsel %vm167, %v270, 0.0
    %285 = vadd.xlane.f32.xlu0 %v284
    %v286 = vpop.xlane.xlu0 %285
    %v287 = vsel %vm167, %v275, 0.0
    %288 = vadd.xlane.f32.xlu0 %v287
    %v289 = vpop.xlane.xlu0 %288
    %v290 = vadd.f32 %v180, %v280
    %v291 = vadd.f32 %v181, %v283
    %v292 = vadd.f32 %v182, %v286
    %v293 = vadd.f32 %v183, %v289
    %v294 = vrcp.pop 32.0
    %v295 = vmul.f32 %v290, %v294
    %v296 = vmul.f32 %v291, %v294
    %v297 = vmul.f32 %v292, %v294
    %v298 = vmul.f32 %v293, %v294
    %v299 = vsub.f32 %v149, %v295
    %v300 = vsub.f32 %v154, %v296
    %v301 = vsub.f32 %v159, %v297
    %v302 = vsub.f32 %v164, %v298
    %v303 = vmul.f32 %v299, %v299
    %v304 = vmul.f32 %v300, %v300
    %v305 = vmul.f32 %v301, %v301
    %v306 = vmul.f32 %v302, %v302
    %v307 = vsel %vm167, %v303, 0.0
    %308 = vadd.xlane.f32.xlu0 %v307
    %v309 = vpop.xlane.xlu0 %308
    %v310 = vsel %vm167, %v304, 0.0
    %311 = vadd.xlane.f32.xlu0 %v310
    %v312 = vpop.xlane.xlu0 %311
    %v313 = vsel %vm167, %v305, 0.0
    %314 = vadd.xlane.f32.xlu0 %v313
    %v315 = vpop.xlane.xlu0 %314
    %v316 = vsel %vm167, %v306, 0.0
    %317 = vadd.xlane.f32.xlu0 %v316
    %v318 = vpop.xlane.xlu0 %317
    %v319 = vadd.f32 %v309, 0.0
    %v320 = vadd.f32 %v312, 0.0
    %v321 = vadd.f32 %v315, 0.0
    %v322 = vadd.f32 %v318, 0.0
    %v323 = vsub.f32 %v260, %v295
    %v324 = vsub.f32 %v265, %v296
    %v325 = vsub.f32 %v270, %v297
    %v326 = vsub.f32 %v275, %v298
    %v327 = vmul.f32 %v323, %v323
    %v328 = vmul.f32 %v324, %v324
    %v329 = vmul.f32 %v325, %v325
    %v330 = vmul.f32 %v326, %v326
    %v331 = vsel %vm167, %v327, 0.0
    %332 = vadd.xlane.f32.xlu0 %v331
    %v333 = vpop.xlane.xlu0 %332
    %v334 = vsel %vm167, %v328, 0.0
    %335 = vadd.xlane.f32.xlu0 %v334
    %v336 = vpop.xlane.xlu0 %335
    %v337 = vsel %vm167, %v329, 0.0
    %338 = vadd.xlane.f32.xlu0 %v337
    %v339 = vpop.xlane.xlu0 %338
    %v340 = vsel %vm167, %v330, 0.0
    %341 = vadd.xlane.f32.xlu0 %v340
    %v342 = vpop.xlane.xlu0 %341
    %v343 = vadd.f32 %v319, %v333
    %v344 = vadd.f32 %v320, %v336
    %v345 = vadd.f32 %v321, %v339
    %v346 = vadd.f32 %v322, %v342
    %v347 = vld [vmem:[%s3] sm:$0xff]
    %v348 = vld [vmem:[%s3 + $0x8] sm:$0xff]
    %v349 = vld [vmem:[%s3 + $0x10] sm:$0xff]
    %v350 = vld [vmem:[%s3 + $0x18] sm:$0xff]
    %v351 = vmul.f32 %v343, %v294
    %v352 = vmul.f32 %v344, %v294
    %v353 = vmul.f32 %v345, %v294
    %v354 = vmul.f32 %v346, %v294
    %v355 = vadd.f32 %v351, 1e-05
    %v356 = vadd.f32 %v352, 1e-05
    %v357 = vadd.f32 %v353, 1e-05
    %v358 = vadd.f32 %v354, 1e-05
    %v359 = vrsqrt.pop %v355
    %v360 = vrsqrt.pop %v356
    %v361 = vrsqrt.pop %v357
    %v362 = vrsqrt.pop %v358
    %v363 = vmul.f32 %v347, %v359
    %v364 = vmul.f32 %v348, %v360
    %v365 = vmul.f32 %v349, %v361
    %v366 = vmul.f32 %v350, %v362
    %v367 = vld [vmem:[%s4] sm:$0xff]
    %v368 = vld [vmem:[%s4 + $0x8] sm:$0xff]
    %v369 = vld [vmem:[%s4 + $0x10] sm:$0xff]
    %v370 = vld [vmem:[%s4 + $0x18] sm:$0xff]
    %v371 = vmul.f32 %v295, %v363
    %v372 = vmul.f32 %v296, %v364
    %v373 = vmul.f32 %v297, %v365
    %v374 = vmul.f32 %v298, %v366
    %v375 = vsub.f32 %v367, %v371
    %v376 = vsub.f32 %v368, %v372
    %v377 = vsub.f32 %v369, %v373
    %v378 = vsub.f32 %v370, %v374
    %380 = vset.pattern.permute.xlu0 0
    %381 = vperm.xlu0 %380, %v363
    %v382 = vpop.permute.xlu0 %381
    %385 = vset.pattern.permute.xlu0 0
    %386 = vperm.xlu0 %385, %v364
    %v387 = vpop.permute.xlu0 %386
    %390 = vset.pattern.permute.xlu0 0
    %391 = vperm.xlu0 %390, %v365
    %v392 = vpop.permute.xlu0 %391
    %395 = vset.pattern.permute.xlu0 0
    %396 = vperm.xlu0 %395, %v366
    %v397 = vpop.permute.xlu0 %396
    %v399 = vmul.f32 %v149, %v382
    %v400 = vmul.f32 %v154, %v387
    %v401 = vmul.f32 %v159, %v392
    %v402 = vmul.f32 %v164, %v397
    %404 = vset.pattern.permute.xlu0 0
    %405 = vperm.xlu0 %404, %v375
    %v406 = vpop.permute.xlu0 %405
    %409 = vset.pattern.permute.xlu0 0
    %410 = vperm.xlu0 %409, %v376
    %v411 = vpop.permute.xlu0 %410
    %414 = vset.pattern.permute.xlu0 0
    %415 = vperm.xlu0 %414, %v377
    %v416 = vpop.permute.xlu0 %415
    %419 = vset.pattern.permute.xlu0 0
    %420 = vperm.xlu0 %419, %v378
    %v421 = vpop.permute.xlu0 %420
    %v423 = vadd.f32 %v399, %v406
    %v424 = vadd.f32 %v400, %v411
    %v425 = vadd.f32 %v401, %v416
    %v426 = vadd.f32 %v402, %v421
    %v427 = vmax.f32 %v423, 0.0
    %v428 = vmax.f32 %v424, 0.0
    %v429 = vmax.f32 %v425, 0.0
    %v430 = vmax.f32 %v426, 0.0
    %v431 = vld [vmem:[%s5] sm:$0xf]
    %v432 = vld [vmem:[%s6] sm:$0xf]
    %434 = vset.pattern.permute.xlu0 0
    %435 = vperm.xlu0 %434, %v432
    %v436 = vpop.permute.xlu0 %435
    %vm438 = vcmask 261120
    %v440 = vsel %vm438, %v431, 0
    %442 = vmatprep.subr.mxu0 0.0
    %443 = vmatpush1.msra.mxu0 %v427
    %444 = vmatprep.subr.mxu0 0.0
    %445 = vmatpush1.msra.mxu0 %v428
    %446 = vmatprep.subr.mxu0 0.0
    %447 = vmatpush1.msra.mxu0 %v429
    %448 = vmatprep.subr.mxu0 0.0
    %449 = vmatpush1.msra.mxu0 %v430
    %450 = vmatprep.subr.mxu0 0.0
    %451 = vmatpush1.msra.mxu0 0.0
    %452 = vmatprep.subr.mxu0 0.0
    %453 = vmatpush1.msra.mxu0 0.0
    %454 = vmatprep.subr.mxu0 0.0
    %455 = vmatpush1.msra.mxu0 0.0
    %456 = vmatprep.subr.mxu0 0.0
    %457 = vmatpush1.msra.mxu0 0.0
    %458 = vmatprep.subr.mxu0 0.0
    %459 = vmatpush1.msra.mxu0 0.0
    %460 = vmatprep.subr.mxu0 0.0
    %461 = vmatpush1.msra.mxu0 0.0
    %462 = vmatprep.subr.mxu0 0.0
    %463 = vmatpush1.msra.mxu0 0.0
    %464 = vmatprep.subr.mxu0 0.0
    %465 = vmatpush1.msra.mxu0 0.0
    %466 = vmatprep.subr.mxu0 0.0
    %467 = vmatpush1.msra.mxu0 0.0
    %468 = vmatprep.subr.mxu0 0.0
    %469 = vmatpush1.msra.mxu0 0.0
    %470 = vmatprep.subr.mxu0 0.0
    %471 = vmatpush1.msra.mxu0 0.0
    %472 = vmatprep.subr.mxu0 0.0
    %473 = vmatpush1.msra.mxu0 0.0
    %474 = vmatprep.subr.mxu0 0.0
    %475 = vmatpush1.msra.mxu0 0.0
    %476 = vmatprep.subr.mxu0 0.0
    %477 = vmatpush1.msra.mxu0 0.0
    %478 = vmatprep.subr.mxu0 0.0
    %479 = vmatpush1.msra.mxu0 0.0
    %480 = vmatprep.subr.mxu0 0.0
    %481 = vmatpush1.msra.mxu0 0.0
    %482 = vmatprep.subr.mxu0 0.0
    %483 = vmatpush1.msra.mxu0 0.0
    %484 = vmatprep.subr.mxu0 0.0
    %485 = vmatpush1.msra.mxu0 0.0
    %486 = vmatprep.subr.mxu0 0.0
    %487 = vmatpush1.msra.mxu0 0.0
    %488 = vmatprep.subr.mxu0 0.0
    %489 = vmatpush1.msra.mxu0 0.0
    %490 = vmatprep.subr.mxu0 0.0
    %491 = vmatpush1.msra.mxu0 0.0
    %492 = vmatprep.subr.mxu0 0.0
    %493 = vmatpush1.msra.mxu0 0.0
    %494 = vmatprep.subr.mxu0 0.0
    %495 = vmatpush1.msra.mxu0 0.0
    %496 = vmatprep.subr.mxu0 0.0
    %497 = vmatpush1.msra.mxu0 0.0
    %498 = vmatprep.subr.mxu0 0.0
    %499 = vmatpush1.msra.mxu0 0.0
    %500 = vmatprep.subr.mxu0 0.0
    %501 = vmatpush1.msra.mxu0 0.0
    %502 = vmatprep.subr.mxu0 0.0
    %503 = vmatpush1.msra.mxu0 0.0
    %504 = vmatprep.subr.mxu0 0.0
    %505 = vmatpush1.msra.mxu0 0.0
    %506 = vmatprep.mubr.f32.mxu0 0.0
    %507 = vmatmul.mubr.f32.gmra.mrb[0].mxu0 %v440
    %v508 = vpop.f32.mrb[0].mxu0
    %v509 = vadd.f32 %v436, %v508
    %v510 = vpop.f32.mrb[0].mxu0
    %511 = vdwg.mxu0
    %vm512 = vcmask 125952
    %v513 = vsel %vm512, %v509, 0.0
    %514 = vadd.xlane.f32.xlu0 %v513
    %v515 = vpop.xlane.xlu0 %514
    %v516 = vadd.f32 %v515, 0.0
    %v517 = vmul.f32 %v260, %v382
    %v518 = vmul.f32 %v265, %v387
    %v519 = vmul.f32 %v270, %v392
    %v520 = vmul.f32 %v275, %v397
    %v521 = vadd.f32 %v517, %v406
    %v522 = vadd.f32 %v518, %v411
    %v523 = vadd.f32 %v519, %v416
    %v524 = vadd.f32 %v520, %v421
    %v525 = vmax.f32 %v521, 0.0
    %v526 = vmax.f32 %v522, 0.0
    %v527 = vmax.f32 %v523, 0.0
    %v528 = vmax.f32 %v524, 0.0
    %529 = vmatprep.subr.mxu0 0.0
    %530 = vmatpush1.msra.mxu0 %v525
    %531 = vmatprep.subr.mxu0 0.0
    %532 = vmatpush1.msra.mxu0 %v526
    %533 = vmatprep.subr.mxu0 0.0
    %534 = vmatpush1.msra.mxu0 %v527
    %535 = vmatprep.subr.mxu0 0.0
    %536 = vmatpush1.msra.mxu0 %v528
    %537 = vmatprep.subr.mxu0 0.0
    %538 = vmatpush1.msra.mxu0 0.0
    %539 = vmatprep.subr.mxu0 0.0
    %540 = vmatpush1.msra.mxu0 0.0
    %541 = vmatprep.subr.mxu0 0.0
    %542 = vmatpush1.msra.mxu0 0.0
    %543 = vmatprep.subr.mxu0 0.0
    %544 = vmatpush1.msra.mxu0 0.0
    %545 = vmatprep.subr.mxu0 0.0
    %546 = vmatpush1.msra.mxu0 0.0
    %547 = vmatprep.subr.mxu0 0.0
    %548 = vmatpush1.msra.mxu0 0.0
    %549 = vmatprep.subr.mxu0 0.0
    %550 = vmatpush1.msra.mxu0 0.0
    %551 = vmatprep.subr.mxu0 0.0
    %552 = vmatpush1.msra.mxu0 0.0
    %553 = vmatprep.subr.mxu0 0.0
    %554 = vmatpush1.msra.mxu0 0.0
    %555 = vmatprep.subr.mxu0 0.0
    %556 = vmatpush1.msra.mxu0 0.0
    %557 = vmatprep.subr.mxu0 0.0
    %558 = vmatpush1.msra.mxu0 0.0
    %559 = vmatprep.subr.mxu0 0.0
    %560 = vmatpush1.msra.mxu0 0.0
    %561 = vmatprep.subr.mxu0 0.0
    %562 = vmatpush1.msra.mxu0 0.0
    %563 = vmatprep.subr.mxu0 0.0
    %564 = vmatpush1.msra.mxu0 0.0
    %565 = vmatprep.subr.mxu0 0.0
    %566 = vmatpush1.msra.mxu0 0.0
    %567 = vmatprep.subr.mxu0 0.0
    %568 = vmatpush1.msra.mxu0 0.0
    %569 = vmatprep.subr.mxu0 0.0
    %570 = vmatpush1.msra.mxu0 0.0
    %571 = vmatprep.subr.mxu0 0.0
    %572 = vmatpush1.msra.mxu0 0.0
    %573 = vmatprep.subr.mxu0 0.0
    %574 = vmatpush1.msra.mxu0 0.0
    %575 = vmatprep.subr.mxu0 0.0
    %576 = vmatpush1.msra.mxu0 0.0
    %577 = vmatprep.subr.mxu0 0.0
    %578 = vmatpush1.msra.mxu0 0.0
    %579 = vmatprep.subr.mxu0 0.0
    %580 = vmatpush1.msra.mxu0 0.0
    %581 = vmatprep.subr.mxu0 0.0
    %582 = vmatpush1.msra.mxu0 0.0
    %583 = vmatprep.subr.mxu0 0.0
    %584 = vmatpush1.msra.mxu0 0.0
    %585 = vmatprep.subr.mxu0 0.0
    %586 = vmatpush1.msra.mxu0 0.0
    %587 = vmatprep.subr.mxu0 0.0
    %588 = vmatpush1.msra.mxu0 0.0
    %589 = vmatprep.subr.mxu0 0.0
    %590 = vmatpush1.msra.mxu0 0.0
    %591 = vmatprep.subr.mxu0 0.0
    %592 = vmatpush1.msra.mxu0 0.0
    %593 = vmatprep.mubr.f32.mxu0 0.0
    %594 = vmatmul.mubr.f32.gmra.mrb[0].mxu0 %v440
    %v595 = vpop.f32.mrb[0].mxu0
    %v596 = vadd.f32 %v436, %v595
    %v597 = vpop.f32.mrb[0].mxu0
    %598 = vdwg.mxu0
    %v599 = vsel %vm512, %v596, 0.0
    %600 = vadd.xlane.f32.xlu0 %v599
    %v601 = vpop.xlane.xlu0 %600
    %v602 = vadd.f32 %v516, %v601
    %v603 = vmul.f32 %v602, %v294
    %v604 = vsub.f32 %v509, %v603
    %v605 = vmul.f32 %v604, %v604
    %v606 = vsel %vm512, %v605, 0.0
    %607 = vadd.xlane.f32.xlu0 %v606
    %v608 = vpop.xlane.xlu0 %607
    %v609 = vadd.f32 %v608, 0.0
    %v610 = vsub.f32 %v596, %v603
    %v611 = vmul.f32 %v610, %v610
    %v612 = vsel %vm512, %v611, 0.0
    %613 = vadd.xlane.f32.xlu0 %v612
    %v614 = vpop.xlane.xlu0 %613
    %v615 = vadd.f32 %v609, %v614
    %v616 = vld [vmem:[%s7] sm:$0xf]
    %v617 = vmul.f32 %v615, %v294
    %v618 = vadd.f32 %v617, 1e-05
    %v619 = vrsqrt.pop %v618
    %v620 = vmul.f32 %v616, %v619
    %v621 = vld [vmem:[%s8] sm:$0xf]
    %v622 = vmul.f32 %v603, %v620
    %v623 = vsub.f32 %v621, %v622
    %625 = vset.pattern.permute.xlu0 0
    %626 = vperm.xlu0 %625, %v620
    %v627 = vpop.permute.xlu0 %626
    %v629 = vmul.f32 %v509, %v627
    %631 = vset.pattern.permute.xlu0 0
    %632 = vperm.xlu0 %631, %v623
    %v633 = vpop.permute.xlu0 %632
    %v635 = vadd.f32 %v629, %v633
    %636 = vst.msk [vmem:[#allocation2] sm:$0xf] %vm512, %v635
    %v637 = vmul.f32 %v596, %v627
    %v638 = vadd.f32 %v637, %v633
    %s639 = scalar_lea.vmem [#allocation2], 4
    %640 = vst.msk [vmem:[%s639] sm:$0xf] %vm512, %v638
    // Predicated region
    $region38: #{tf_decoder_forward.1} parent=1 // pred_check
      _
    $region39: #{tf_decoder_forward.1} parent=1 // pred_check_branch
      %642 = sbr.rel (0) target = $region41
    $region40: #{tf_decoder_forward.1} parent=1 // pred_region
      %s644 = ssub.s32 128, 128
      %645 = vsyncadd [#allocation3], %s644
      %s646 = sshll.u32 [#allocation2], 4
      %s647 = int_to_ptr.vmem [resolvable:$true] %s646
      %652 = dma.vmem_to_hbm [thread:$0]  %s647, 128, %s9, [#allocation3], 64, 64, 4
    $region41: #{tf_decoder_forward.1} parent=1 // pred_fallthru
      _
    // Predicated region
    $region42: #{tf_decoder_forward.1} parent=1 // pred_check
      _
    $region43: #{tf_decoder_forward.1} parent=1 // pred_check_branch
      %654 = sbr.rel (0) target = $region45
    $region44: #{tf_decoder_forward.1} parent=1 // pred_region
      %655 = dma.done [#allocation3], 128
    $region45: #{tf_decoder_forward.1} parent=1 // pred_fallthru
      _
    %656 = vsyncpa [#allocation3], 1

</llo_original>
